<compile_context>
chip_gen: v5e
topology: v5e:2x2
jax: 0.10.0
libtpu: 0.0.40
codegen_flags: <defaults>
</compile_context>

<pallas_src>
import jax
import jax.numpy as jnp
from jax.experimental import pallas as pl
from jax.experimental.pallas import tpu as pltpu


def _round_up(a, m):
    return -(-a // m) * m


def _make_pad_kernel(H, W, H_out, W_out, top, bottom, left, right):
    """Kernel over lane-dense blocks: x (Pblk, H*W) -> o (Pblk, H_out*W_out)."""
    any_pad = (top or bottom or left or right)

    def pad_kernel(x_ref, o_ref):
        # Full-tile zero fill: unmasked, lane-dense stores.  Interior is then
        # overwritten below (cheaper than many narrow border-strip stores).
        if any_pad:
            o_ref[...] = jnp.zeros_like(o_ref)

        if left == 0 and right == 0:
            # Rows stay contiguous when there is no W padding: one big store.
            o_ref[:, top * W_out:(top + H) * W_out] = x_ref[...]
        else:
            # Static lane slices (all offsets are Python ints).  H is small
            # for the CIFAR-style shapes this module targets, so a static
            # unroll is fine.
            for h in range(H):
                dst = (top + h) * W_out + left
                o_ref[:, dst:dst + W] = x_ref[:, h * W:(h + 1) * W]

    return pad_kernel


def encoder_padding(x, kernel_size, stride, *,
                    vmem_block_budget_bytes=8 * 1024 * 1024):
    """Pallas TPU implementation of EncoderPadding.forward (NCHW in/out)."""
    assert kernel_size % 2 == 1, "Kernel size must be odd"
    N, C, H, W = x.shape
    p = kernel_size // 2

    # Static padding arithmetic (trace-time constants).
    length = H + 2 * p
    remain = length % stride
    leftpad = remain // 2                 # extra top padding on H
    rightpad = remain // 2 + remain % 2   # extra bottom padding on H

    H_out = H + 2 * p + leftpad + rightpad
    W_out = W + 2 * p

    top = p + leftpad      # rows of zeros above the input
    bottom = p + rightpad  # rows of zeros below the input
    left = p               # cols of zeros left of the input
    right = p              # cols of zeros right of the input

    # Fuse N and C, and flatten (H, W) -> H*W: both are free contiguous
    # reshapes, and they make the last (lane) dim wide -> lane-dense blocks.
    P = N * C
    HW = H * W
    L_out = H_out * W_out
    x2 = x.reshape(P, HW)

    # Plane budget: account for lane padding to 128, the dtype's sublane
    # packing, and double-buffering (x2) of the in/out BlockSpecs.
    itemsize = jnp.dtype(x.dtype).itemsize
    pack = {4: 8, 2: 16, 1: 32}.get(itemsize, 8)   # sublane rows per group
    in_bytes_per_plane = _round_up(HW, 128) * itemsize
    out_bytes_per_plane = _round_up(L_out, 128) * itemsize
    per_plane = 2 * (in_bytes_per_plane + out_bytes_per_plane)
    max_planes = max(1, int(vmem_block_budget_bytes // per_plane))

    if P <= pack:
        Pblk = P                      # full array on the sublane dim -> OK
    else:
        Pblk = min(P, max_planes)
        # Keep >= 2 grid steps when there is enough work so v7x can shard the
        # parallel axis across its 2 TensorCores.
        if Pblk >= P and P >= 2 * pack:
            Pblk = -(-P // 2)
        Pblk = max(pack, (Pblk // pack) * pack)   # multiple of 8 -> (8,128) rule

    grid = (pl.cdiv(P, Pblk),)
    kernel = _make_pad_kernel(H, W, H_out, W_out, top, bottom, left, right)

    out2 = pl.pallas_call(
        kernel,
        out_shape=jax.ShapeDtypeStruct((P, L_out), x.dtype),
        grid_spec=pltpu.PrefetchScalarGridSpec(
            num_scalar_prefetch=0,
            grid=grid,
            in_specs=[pl.BlockSpec((Pblk, HW), lambda i: (i, 0))],
            out_specs=pl.BlockSpec((Pblk, L_out), lambda i: (i, 0)),
        ),
        compiler_params=pltpu.CompilerParams(
            dimension_semantics=("parallel",),
            vmem_limit_bytes=32 * 1024 * 1024,
        ),
    )(x2)
    return out2.reshape(N, C, H_out, W_out)


def encoder_padding_ref(x, kernel_size, stride):
    """Pure-JAX reference mirroring the PyTorch forward."""
    p = kernel_size // 2
    x = jnp.pad(x, ((0, 0), (0, 0), (p, p), (p, p)))
    length = x.shape[-2]
    remain = length % stride
    leftpad = remain // 2
    rightpad = remain // 2 + remain % 2
    return jnp.pad(x, ((0, 0), (0, 0), (leftpad, rightpad), (0, 0)))


if __name__ == "__main__":
    key = jax.random.PRNGKey(0)
    N, C, H, W = 2, 4, 16, 16
    kernel_size, stride = 3, 5   # (16 + 2) % 5 = 3 -> leftpad=1, rightpad=2

    x = jax.random.normal(key, (N, C, H, W), dtype=jnp.float32)

    out = encoder_padding(x, kernel_size, stride)
    out = jax.block_until_ready(out)

    ref = encoder_padding_ref(x, kernel_size, stride)
    assert out.shape == ref.shape, (out.shape, ref.shape)
    assert jnp.allclose(out, ref), "mismatch vs reference"

    print("KERNEL_OK")
</pallas_src>

<mosaic_0001>
module attributes {stable_mosaic.version = 11 : i64} {
  func.func @pad_kernel(%arg0: i32, %arg1: memref<8x256xf32, #tpu.memory_space<vmem>>, %arg2: memref<8x378xf32, #tpu.memory_space<vmem>>) attributes {dimension_semantics = [#tpu.dimension_semantics<parallel>], iteration_bounds = array<i64: 1>, scalar_prefetch = 0 : i64, scratch_operands = 0 : i64, tpu.core_type = #tpu.core_type<tc>, window_params = [{transform_indices = @transform_0, window_bounds = array<i64: 8, 256>}, {transform_indices = @transform_1, window_bounds = array<i64: 8, 378>}]} {
    %cst = arith.constant 0.000000e+00 : f32
    %0 = vector.broadcast %cst : f32 to vector<8x378xf32>
    %c0 = arith.constant 0 : index
    %c0_0 = arith.constant 0 : index
    %1 = vector.load %arg2[%c0, %c0_0] : memref<8x378xf32, #tpu.memory_space<vmem>>, vector<8x378xf32>
    tpu.vector_store %arg2[%c0, %c0_0], %0 {strides = array<i32>} : memref<8x378xf32, #tpu.memory_space<vmem>>, vector<8x378xf32>,
    %c0_1 = arith.constant 0 : index
    %c0_2 = arith.constant 0 : index
    %2 = vector.load %arg1[%c0_1, %c0_2] : memref<8x256xf32, #tpu.memory_space<vmem>>, vector<8x16xf32>
    %c0_3 = arith.constant 0 : index
    %c37 = arith.constant 37 : index
    %3 = vector.load %arg2[%c0_3, %c37] : memref<8x378xf32, #tpu.memory_space<vmem>>, vector<8x16xf32>
    tpu.vector_store %arg2[%c0_3, %c37], %2 {strides = array<i32>} : memref<8x378xf32, #tpu.memory_space<vmem>>, vector<8x16xf32>,
    %c0_4 = arith.constant 0 : index
    %c16 = arith.constant 16 : index
    %4 = vector.load %arg1[%c0_4, %c16] : memref<8x256xf32, #tpu.memory_space<vmem>>, vector<8x16xf32>
    %c0_5 = arith.constant 0 : index
    %c55 = arith.constant 55 : index
    %5 = vector.load %arg2[%c0_5, %c55] : memref<8x378xf32, #tpu.memory_space<vmem>>, vector<8x16xf32>
    tpu.vector_store %arg2[%c0_5, %c55], %4 {strides = array<i32>} : memref<8x378xf32, #tpu.memory_space<vmem>>, vector<8x16xf32>,
    %c0_6 = arith.constant 0 : index
    %c32 = arith.constant 32 : index
    %6 = vector.load %arg1[%c0_6, %c32] : memref<8x256xf32, #tpu.memory_space<vmem>>, vector<8x16xf32>
    %c0_7 = arith.constant 0 : index
    %c73 = arith.constant 73 : index
    %7 = vector.load %arg2[%c0_7, %c73] : memref<8x378xf32, #tpu.memory_space<vmem>>, vector<8x16xf32>
    tpu.vector_store %arg2[%c0_7, %c73], %6 {strides = array<i32>} : memref<8x378xf32, #tpu.memory_space<vmem>>, vector<8x16xf32>,
    %c0_8 = arith.constant 0 : index
    %c48 = arith.constant 48 : index
    %8 = vector.load %arg1[%c0_8, %c48] : memref<8x256xf32, #tpu.memory_space<vmem>>, vector<8x16xf32>
    %c0_9 = arith.constant 0 : index
    %c91 = arith.constant 91 : index
    %9 = vector.load %arg2[%c0_9, %c91] : memref<8x378xf32, #tpu.memory_space<vmem>>, vector<8x16xf32>
    tpu.vector_store %arg2[%c0_9, %c91], %8 {strides = array<i32>} : memref<8x378xf32, #tpu.memory_space<vmem>>, vector<8x16xf32>,
    %c0_10 = arith.constant 0 : index
    %c64 = arith.constant 64 : index
    %10 = vector.load %arg1[%c0_10, %c64] : memref<8x256xf32, #tpu.memory_space<vmem>>, vector<8x16xf32>
    %c0_11 = arith.constant 0 : index
    %c109 = arith.constant 109 : index
    %11 = vector.load %arg2[%c0_11, %c109] : memref<8x378xf32, #tpu.memory_space<vmem>>, vector<8x16xf32>
    tpu.vector_store %arg2[%c0_11, %c109], %10 {strides = array<i32>} : memref<8x378xf32, #tpu.memory_space<vmem>>, vector<8x16xf32>,
    %c0_12 = arith.constant 0 : index
    %c80 = arith.constant 80 : index
    %12 = vector.load %arg1[%c0_12, %c80] : memref<8x256xf32, #tpu.memory_space<vmem>>, vector<8x16xf32>
    %c0_13 = arith.constant 0 : index
    %c127 = arith.constant 127 : index
    %13 = vector.load %arg2[%c0_13, %c127] : memref<8x378xf32, #tpu.memory_space<vmem>>, vector<8x16xf32>
    tpu.vector_store %arg2[%c0_13, %c127], %12 {strides = array<i32>} : memref<8x378xf32, #tpu.memory_space<vmem>>, vector<8x16xf32>,
    %c0_14 = arith.constant 0 : index
    %c96 = arith.constant 96 : index
    %14 = vector.load %arg1[%c0_14, %c96] : memref<8x256xf32, #tpu.memory_space<vmem>>, vector<8x16xf32>
    %c0_15 = arith.constant 0 : index
    %c145 = arith.constant 145 : index
    %15 = vector.load %arg2[%c0_15, %c145] : memref<8x378xf32, #tpu.memory_space<vmem>>, vector<8x16xf32>
    tpu.vector_store %arg2[%c0_15, %c145], %14 {strides = array<i32>} : memref<8x378xf32, #tpu.memory_space<vmem>>, vector<8x16xf32>,
    %c0_16 = arith.constant 0 : index
    %c112 = arith.constant 112 : index
    %16 = vector.load %arg1[%c0_16, %c112] : memref<8x256xf32, #tpu.memory_space<vmem>>, vector<8x16xf32>
    %c0_17 = arith.constant 0 : index
    %c163 = arith.constant 163 : index
    %17 = vector.load %arg2[%c0_17, %c163] : memref<8x378xf32, #tpu.memory_space<vmem>>, vector<8x16xf32>
    tpu.vector_store %arg2[%c0_17, %c163], %16 {strides = array<i32>} : memref<8x378xf32, #tpu.memory_space<vmem>>, vector<8x16xf32>,
    %c0_18 = arith.constant 0 : index
    %c128 = arith.constant 128 : index
    %18 = vector.load %arg1[%c0_18, %c128] : memref<8x256xf32, #tpu.memory_space<vmem>>, vector<8x16xf32>
    %c0_19 = arith.constant 0 : index
    %c181 = arith.constant 181 : index
    %19 = vector.load %arg2[%c0_19, %c181] : memref<8x378xf32, #tpu.memory_space<vmem>>, vector<8x16xf32>
    tpu.vector_store %arg2[%c0_19, %c181], %18 {strides = array<i32>} : memref<8x378xf32, #tpu.memory_space<vmem>>, vector<8x16xf32>,
    %c0_20 = arith.constant 0 : index
    %c144 = arith.constant 144 : index
    %20 = vector.load %arg1[%c0_20, %c144] : memref<8x256xf32, #tpu.memory_space<vmem>>, vector<8x16xf32>
    %c0_21 = arith.constant 0 : index
    %c199 = arith.constant 199 : index
    %21 = vector.load %arg2[%c0_21, %c199] : memref<8x378xf32, #tpu.memory_space<vmem>>, vector<8x16xf32>
    tpu.vector_store %arg2[%c0_21, %c199], %20 {strides = array<i32>} : memref<8x378xf32, #tpu.memory_space<vmem>>, vector<8x16xf32>,
    %c0_22 = arith.constant 0 : index
    %c160 = arith.constant 160 : index
    %22 = vector.load %arg1[%c0_22, %c160] : memref<8x256xf32, #tpu.memory_space<vmem>>, vector<8x16xf32>
    %c0_23 = arith.constant 0 : index
    %c217 = arith.constant 217 : index
    %23 = vector.load %arg2[%c0_23, %c217] : memref<8x378xf32, #tpu.memory_space<vmem>>, vector<8x16xf32>
    tpu.vector_store %arg2[%c0_23, %c217], %22 {strides = array<i32>} : memref<8x378xf32, #tpu.memory_space<vmem>>, vector<8x16xf32>,
    %c0_24 = arith.constant 0 : index
    %c176 = arith.constant 176 : index
    %24 = vector.load %arg1[%c0_24, %c176] : memref<8x256xf32, #tpu.memory_space<vmem>>, vector<8x16xf32>
    %c0_25 = arith.constant 0 : index
    %c235 = arith.constant 235 : index
    %25 = vector.load %arg2[%c0_25, %c235] : memref<8x378xf32, #tpu.memory_space<vmem>>, vector<8x16xf32>
    tpu.vector_store %arg2[%c0_25, %c235], %24 {strides = array<i32>} : memref<8x378xf32, #tpu.memory_space<vmem>>, vector<8x16xf32>,
    %c0_26 = arith.constant 0 : index
    %c192 = arith.constant 192 : index
    %26 = vector.load %arg1[%c0_26, %c192] : memref<8x256xf32, #tpu.memory_space<vmem>>, vector<8x16xf32>
    %c0_27 = arith.constant 0 : index
    %c253 = arith.constant 253 : index
    %27 = vector.load %arg2[%c0_27, %c253] : memref<8x378xf32, #tpu.memory_space<vmem>>, vector<8x16xf32>
    tpu.vector_store %arg2[%c0_27, %c253], %26 {strides = array<i32>} : memref<8x378xf32, #tpu.memory_space<vmem>>, vector<8x16xf32>,
    %c0_28 = arith.constant 0 : index
    %c208 = arith.constant 208 : index
    %28 = vector.load %arg1[%c0_28, %c208] : memref<8x256xf32, #tpu.memory_space<vmem>>, vector<8x16xf32>
    %c0_29 = arith.constant 0 : index
    %c271 = arith.constant 271 : index
    %29 = vector.load %arg2[%c0_29, %c271] : memref<8x378xf32, #tpu.memory_space<vmem>>, vector<8x16xf32>
    tpu.vector_store %arg2[%c0_29, %c271], %28 {strides = array<i32>} : memref<8x378xf32, #tpu.memory_space<vmem>>, vector<8x16xf32>,
    %c0_30 = arith.constant 0 : index
    %c224 = arith.constant 224 : index
    %30 = vector.load %arg1[%c0_30, %c224] : memref<8x256xf32, #tpu.memory_space<vmem>>, vector<8x16xf32>
    %c0_31 = arith.constant 0 : index
    %c289 = arith.constant 289 : index
    %31 = vector.load %arg2[%c0_31, %c289] : memref<8x378xf32, #tpu.memory_space<vmem>>, vector<8x16xf32>
    tpu.vector_store %arg2[%c0_31, %c289], %30 {strides = array<i32>} : memref<8x378xf32, #tpu.memory_space<vmem>>, vector<8x16xf32>,
    %c0_32 = arith.constant 0 : index
    %c240 = arith.constant 240 : index
    %32 = vector.load %arg1[%c0_32, %c240] : memref<8x256xf32, #tpu.memory_space<vmem>>, vector<8x16xf32>
    %c0_33 = arith.constant 0 : index
    %c307 = arith.constant 307 : index
    %33 = vector.load %arg2[%c0_33, %c307] : memref<8x378xf32, #tpu.memory_space<vmem>>, vector<8x16xf32>
    tpu.vector_store %arg2[%c0_33, %c307], %32 {strides = array<i32>} : memref<8x378xf32, #tpu.memory_space<vmem>>, vector<8x16xf32>,
    return
  }
  func.func @transform_0(%arg0: i32) -> (i32, i32) {
    %c0_i32 = arith.constant 0 : i32
    %c0_i32_0 = arith.constant 0 : i32
    return %arg0, %c0_i32 : i32, i32
  }
  func.func @transform_1(%arg0: i32) -> (i32, i32) {
    %c0_i32 = arith.constant 0 : i32
    %c0_i32_0 = arith.constant 0 : i32
    return %arg0, %c0_i32 : i32, i32
  }
}

</mosaic_0001>

<llo_original>
// kernel: tpu_custom_call.1
$region0: #{tpu_custom_call.1}
  #allocation0 [shape = 'u32[]', space=smem, size = 0x4, offset = 0x4, fixed_abs, tag = 'smem constant byte address 0x4 - core index']
  #allocation1 [shape = 'u32[72,128]{1,0:T(1,128)}', space=vmem, size = 0x9000, scoped, tag = 'internal scratch']
  %s0 = inlined_call_operand.hbm [shape: f32[8,256], index: 0, kind: input, shape index: {}]
  %s1 = inlined_call_operand.hbm [shape: f32[8,378], index: 1, kind: output, shape index: {}]
  %s2 = sld [smem:[#allocation0]]
  $region18: #{tpu_custom_call.1} parent=0
    _
  %s4 = ssub.s32 1, %s2
  %s5 = scalar_select 0, %s4, %s2
  $region1: #{tpu_custom_call.1} parent=0
    #allocation2 [shape = 'u8[8192]{0}', space=vmem, size = 0x2000, scoped, tag = 'input window, operand 0, single buffered']
    #allocation3 [shape = 's32[1]{0}', space=sflag, size = 0x4, scoped, tag = 'scoped memory for tpu_custom_call.1']
    #allocation4 [shape = 's32[1]{0}', space=sflag, size = 0x4, scoped, tag = 'scoped memory for tpu_custom_call.1']
    #allocation5 [shape = 'u8[12288]{0}', space=vmem, size = 0x3000, scoped, tag = 'output window, operand 0, single buffered']
    %6 = vsyncpa [#allocation3], 0
    %7 = vsyncpa [#allocation4], 0
    // Predicated region
    $region2: #{tpu_custom_call.1} parent=1 // pred_check
      _
    $region3: #{tpu_custom_call.1} parent=1 // pred_check_branch
      %9 = sbr.rel (0) target = $region5
    $region4: #{tpu_custom_call.1} parent=1 // pred_region
      %11 = vsyncadd [#allocation3], 0
      %s13 = sshll.u32 %s0, 4
      %s14 = int_to_ptr.hbm [resolvable:$true] %s13
      %s15 = sshll.u32 [#allocation2], 4
      %s16 = int_to_ptr.vmem [resolvable:$true] %s15
      %18 = dma.hbm_to_vmem [thread:$0]  %s14, 256, %s16, [#allocation3]
    $region5: #{tpu_custom_call.1} parent=1 // pred_fallthru
      _
    // Predicated region
    $region6: #{tpu_custom_call.1} parent=1 // pred_check
      _
    $region7: #{tpu_custom_call.1} parent=1 // pred_check_branch
      %20 = sbr.rel (0) target = $region9
    $region8: #{tpu_custom_call.1} parent=1 // pred_region
      %22 = dma.done [#allocation3], 256
    $region9: #{tpu_custom_call.1} parent=1 // pred_fallthru
      _
    %23 = vst [vmem:[#allocation5] sm:$0xff] 0.0
    %24 = vst [vmem:[#allocation5 + $0x8] sm:$0xff] 0.0
    %vm25 = vcmask 998400
    %26 = vst.msk [vmem:[#allocation5 + $0x10] sm:$0xff] %vm25, 0.0
    %v27 = vld [vmem:[#allocation2] sm:$0xff]
    %29 = vrot.lane.b32.xlu0 %v27, 37
    %v30 = vpop.permute.xlu0 %29
    %vm32 = vcmask 433448
    %33 = vst.msk [vmem:[#allocation5] sm:$0xff] %vm32, %v30
    %v34 = vld [vmem:[#allocation2] sm:$0xff]
    %36 = vrot.lane.b32.xlu0 %v34, 39
    %v37 = vpop.permute.xlu0 %36
    %vm39 = vcmask 581048
    %40 = vst.msk [vmem:[#allocation5] sm:$0xff] %vm39, %v37
    %v41 = vld [vmem:[#allocation2] sm:$0xff]
    %43 = vrot.lane.b32.xlu0 %v41, 41
    %v44 = vpop.permute.xlu0 %43
    %vm46 = vcmask 728648
    %47 = vst.msk [vmem:[#allocation5] sm:$0xff] %vm46, %v44
    %v48 = vld [vmem:[#allocation2] sm:$0xff]
    %50 = vrot.lane.b32.xlu0 %v48, 43
    %v51 = vpop.permute.xlu0 %50
    %vm53 = vcmask 876248
    %54 = vst.msk [vmem:[#allocation5] sm:$0xff] %vm53, %v51
    %v55 = vld [vmem:[#allocation2] sm:$0xff]
    %57 = vrot.lane.b32.xlu0 %v55, 45
    %v58 = vpop.permute.xlu0 %57
    %vm60 = vcmask 1023848
    %61 = vst.msk [vmem:[#allocation5] sm:$0xff] %vm60, %v58
    %v62 = vld [vmem:[#allocation2] sm:$0xff]
    %64 = vrot.lane.b32.xlu0 %v62, 47
    %v65 = vpop.permute.xlu0 %64
    %vm67 = vcmask 1048568
    %68 = vst.msk [vmem:[#allocation5] sm:$0xff] %vm67, %v65
    %vm69 = vcmask 121856
    %70 = vst.msk [vmem:[#allocation5 + $0x8] sm:$0xff] %vm69, %v65
    %v71 = vld [vmem:[#allocation2] sm:$0xff]
    %73 = vrot.lane.b32.xlu0 %v71, 49
    %v74 = vpop.permute.xlu0 %73
    %vm76 = vcmask 269448
    %77 = vst.msk [vmem:[#allocation5 + $0x8] sm:$0xff] %vm76, %v74
    %v78 = vld [vmem:[#allocation2] sm:$0xff]
    %80 = vrot.lane.b32.xlu0 %v78, 51
    %v81 = vpop.permute.xlu0 %80
    %vm83 = vcmask 417048
    %84 = vst.msk [vmem:[#allocation5 + $0x8] sm:$0xff] %vm83, %v81
    %v85 = vld [vmem:[#allocation2 + $0x8] sm:$0xff]
    %87 = vrot.lane.b32.xlu0 %v85, 53
    %v88 = vpop.permute.xlu0 %87
    %vm90 = vcmask 564648
    %91 = vst.msk [vmem:[#allocation5 + $0x8] sm:$0xff] %vm90, %v88
    %v92 = vld [vmem:[#allocation2 + $0x8] sm:$0xff]
    %94 = vrot.lane.b32.xlu0 %v92, 55
    %v95 = vpop.permute.xlu0 %94
    %vm97 = vcmask 712248
    %98 = vst.msk [vmem:[#allocation5 + $0x8] sm:$0xff] %vm97, %v95
    %v99 = vld [vmem:[#allocation2 + $0x8] sm:$0xff]
    %101 = vrot.lane.b32.xlu0 %v99, 57
    %v102 = vpop.permute.xlu0 %101
    %vm104 = vcmask 859848
    %105 = vst.msk [vmem:[#allocation5 + $0x8] sm:$0xff] %vm104, %v102
    %v106 = vld [vmem:[#allocation2 + $0x8] sm:$0xff]
    %108 = vrot.lane.b32.xlu0 %v106, 59
    %v109 = vpop.permute.xlu0 %108
    %vm111 = vcmask 1007448
    %112 = vst.msk [vmem:[#allocation5 + $0x8] sm:$0xff] %vm111, %v109
    %v113 = vld [vmem:[#allocation2 + $0x8] sm:$0xff]
    %115 = vrot.lane.b32.xlu0 %v113, 61
    %v116 = vpop.permute.xlu0 %115
    %vm118 = vcmask 1048552
    %119 = vst.msk [vmem:[#allocation5 + $0x8] sm:$0xff] %vm118, %v116
    %vm120 = vcmask 105472
    %121 = vst.msk [vmem:[#allocation5 + $0x10] sm:$0xff] %vm120, %v116
    %v122 = vld [vmem:[#allocation2 + $0x8] sm:$0xff]
    %124 = vrot.lane.b32.xlu0 %v122, 63
    %v125 = vpop.permute.xlu0 %124
    %vm127 = vcmask 253048
    %128 = vst.msk [vmem:[#allocation5 + $0x10] sm:$0xff] %vm127, %v125
    %v129 = vld [vmem:[#allocation2 + $0x8] sm:$0xff]
    %131 = vrot.lane.b32.xlu0 %v129, 65
    %v132 = vpop.permute.xlu0 %131
    %vm134 = vcmask 400648
    %135 = vst.msk [vmem:[#allocation5 + $0x10] sm:$0xff] %vm134, %v132
    %v136 = vld [vmem:[#allocation2 + $0x8] sm:$0xff]
    %138 = vrot.lane.b32.xlu0 %v136, 67
    %v139 = vpop.permute.xlu0 %138
    %vm141 = vcmask 548248
    %142 = vst.msk [vmem:[#allocation5 + $0x10] sm:$0xff] %vm141, %v139
    // Predicated region
    $region10: #{tpu_custom_call.1} parent=1 // pred_check
      _
    $region11: #{tpu_custom_call.1} parent=1 // pred_check_branch
      %144 = sbr.rel (0) target = $region13
    $region12: #{tpu_custom_call.1} parent=1 // pred_region
      %146 = vsyncadd [#allocation4], 0
      %s148 = sshll.u32 [#allocation5], 4
      %s149 = int_to_ptr.vmem [resolvable:$true] %s148
      %s150 = sshll.u32 %s1, 4
      %s151 = int_to_ptr.hbm [resolvable:$true] %s150
      %153 = dma.vmem_to_hbm [thread:$0]  %s149, 384, %s151, [#allocation4]
    $region13: #{tpu_custom_call.1} parent=1 // pred_fallthru
      _
    // Predicated region
    $region14: #{tpu_custom_call.1} parent=1 // pred_check
      _
    $region15: #{tpu_custom_call.1} parent=1 // pred_check_branch
      %155 = sbr.rel (0) target = $region17
    $region16: #{tpu_custom_call.1} parent=1 // pred_region
      %157 = dma.done [#allocation4], 384
    $region17: #{tpu_custom_call.1} parent=1 // pred_fallthru
      _
    %158 = vsyncpa [#allocation3], 1
    %159 = vsyncpa [#allocation4], 1

</llo_original>
